<compile_context>
chip_gen: v5e
topology: v5e:2x2
jax: 0.10.0
libtpu: 0.0.40
codegen_flags: <defaults>
</compile_context>

<pallas_src>
import jax
import jax.numpy as jnp
from jax import lax
from jax.experimental import pallas as pl
from jax.experimental.pallas import tpu as pltpu

NUM_CLASSES = 10


def _ensemble_kernel(x_ref, wt_ref, b_ref, o_ref):
    """One grid step = one (B-tile, K-chunk) of the member-averaged matmul.

    x_ref : (tb, tk)  bf16 -- K-chunk of flattened images for this batch tile
    wt_ref: (NC, tk)  bf16 -- K-chunk of mean-over-members weights, lane-dense in D
    b_ref : (1, NC)   f32  -- mean-over-members bias (same block every step)
    o_ref : (tb, NC)  f32  -- output; VMEM-resident accumulator across the K axis
    """
    k = pl.program_id(1)

    @pl.when(k == 0)
    def _init():
        o_ref[...] = jnp.zeros_like(o_ref)

    # x_chunk @ W_mean_chunk^T on the MXU, f32 accumulate.
    o_ref[...] += lax.dot_general(
        x_ref[...], wt_ref[...],
        dimension_numbers=(((1,), (1,)), ((), ())),
        preferred_element_type=jnp.float32,
    )

    @pl.when(k == pl.num_programs(1) - 1)
    def _finalize():
        o_ref[...] += b_ref[...]  # broadcast (1, NC) -> (tb, NC)


def _pick_tile(total, target, align):
    """Largest aligned divisor of `total` that is <= target; else the full extent."""
    if total <= target or total % align != 0:
        return total
    t = (target // align) * align
    while t >= align:
        if total % t == 0:
            return t
        t -= align
    return total


def ensemble_forward(x_nchw, weights, biases, *, tb_target=256, tk_target=512):
    """x_nchw: [B, C, H, W]; weights: [M, D, NC]; biases: [M, 1, NC] -> [B, NC].

    Equivalent to mean_m(x_flat @ W_m + b_m) == x_flat @ mean_m(W_m) + mean_m(b_m).
    """
    B = x_nchw.shape[0]
    M, D, NC = weights.shape

    # Fold the ensemble mean into the parameters (exact, members are linear).
    w_mean_t = jnp.mean(weights, axis=0).T.astype(jnp.bfloat16)       # (NC, D), lane-dense
    b_mean = jnp.mean(biases, axis=0).reshape(1, NC).astype(jnp.float32)
    x_flat = x_nchw.reshape(B, D).astype(jnp.bfloat16)

    tb = _pick_tile(B, tb_target, 8)       # batch tile (parallel axis)
    tk = _pick_tile(D, tk_target, 128)     # reduction tile (lane-aligned)
    n_b = B // tb
    n_k = D // tk

    cost = pl.CostEstimate(
        flops=2 * B * D * NC,
        transcendentals=0,
        bytes_accessed=(x_flat.size * 2 + n_b * w_mean_t.size * 2
                        + b_mean.size * 4 + B * NC * 4),
    )

    return pl.pallas_call(
        _ensemble_kernel,
        out_shape=jax.ShapeDtypeStruct((B, NC), jnp.float32),
        grid_spec=pltpu.PrefetchScalarGridSpec(
            num_scalar_prefetch=0,
            grid=(n_b, n_k),
            in_specs=[
                pl.BlockSpec((tb, tk), lambda b, k: (b, k)),    # x (batch, K) tile
                pl.BlockSpec((NC, tk), lambda b, k: (0, k)),    # W_mean^T K-chunk (lanes = D)
                pl.BlockSpec((1, NC), lambda b, k: (0, 0)),     # bias (resident)
            ],
            out_specs=pl.BlockSpec((tb, NC), lambda b, k: (b, 0)),
        ),
        compiler_params=pltpu.CompilerParams(
            # Batch axis independent -> "parallel" (megacore); output block is an
            # accumulator across the K axis -> "arbitrary", kept last.
            dimension_semantics=("parallel", "arbitrary"),
        ),
        cost_estimate=cost,
    )(x_flat, w_mean_t, b_mean)


if __name__ == "__main__":
    # Small shapes consistent with a CIFAR-style ensemble forward.
    B, C, H, W = 2, 4, 16, 16
    M = 3                       # number of ensemble members
    D = C * H * W

    key = jax.random.PRNGKey(0)
    kx, kw, kb = jax.random.split(key, 3)

    x = jax.random.normal(kx, (B, C, H, W), dtype=jnp.float32)
    weights = jax.random.normal(kw, (M, D, NUM_CLASSES), dtype=jnp.float32) * 0.02
    biases = jax.random.normal(kb, (M, 1, NUM_CLASSES), dtype=jnp.float32) * 0.1

    out = ensemble_forward(x, weights, biases)
    out = jax.block_until_ready(out)

    # Pure-JAX f32 reference with the original ensemble semantics:
    # per-model logits, stack on axis=1, mean over axis=1.
    x_flat = x.reshape(B, D)
    per_model = jnp.stack(
        [x_flat @ weights[m] + biases[m, 0] for m in range(M)], axis=1
    )  # [B, M, NC]
    ref = jnp.mean(per_model, axis=1)

    assert out.shape == (B, NUM_CLASSES)
    # bf16 inputs -> slightly looser tolerance than pure-f32.
    assert jnp.allclose(out, ref, atol=2e-2, rtol=2e-2), "mismatch vs reference"

    print("KERNEL_OK")
</pallas_src>

<mosaic_0001>
module attributes {stable_mosaic.version = 11 : i64} {
  func.func @_ensemble_kernel(%arg0: i32, %arg1: i32, %arg2: memref<2x512xbf16, #tpu.memory_space<vmem>>, %arg3: memref<10x512xbf16, #tpu.memory_space<vmem>>, %arg4: memref<1x10xf32, #tpu.memory_space<vmem>>, %arg5: memref<2x10xf32, #tpu.memory_space<vmem>>) attributes {dimension_semantics = [#tpu.dimension_semantics<parallel>, #tpu.dimension_semantics<arbitrary>], iteration_bounds = array<i64: 1, 2>, scalar_prefetch = 0 : i64, scratch_operands = 0 : i64, tpu.core_type = #tpu.core_type<tc>, window_params = [{transform_indices = @transform_0, window_bounds = array<i64: 2, 512>}, {transform_indices = @transform_1, window_bounds = array<i64: 10, 512>}, {pipeline_mode = #tpu.pipeline_mode<synchronous>, transform_indices = @transform_2, window_bounds = array<i64: 1, 10>}, {transform_indices = @transform_3, window_bounds = array<i64: 2, 10>}]} {
    %c0_i32 = arith.constant 0 : i32
    %0 = arith.cmpi eq, %arg1, %c0_i32 : i32
    %1 = arith.extui %0 : i1 to i32
    %c0_i32_0 = arith.constant 0 : i32
    %2 = arith.cmpi ne, %1, %c0_i32_0 : i32
    scf.if %2 {
      %cst_9 = arith.constant 0.000000e+00 : f32
      %12 = vector.broadcast %cst_9 : f32 to vector<2x10xf32>
      %c0_10 = arith.constant 0 : index
      %c0_11 = arith.constant 0 : index
      %13 = vector.load %arg5[%c0_10, %c0_11] : memref<2x10xf32, #tpu.memory_space<vmem>>, vector<2x10xf32>
      tpu.vector_store %arg5[%c0_10, %c0_11], %12 {strides = array<i32>} : memref<2x10xf32, #tpu.memory_space<vmem>>, vector<2x10xf32>,
    } else {
    }
    %c0 = arith.constant 0 : index
    %c0_1 = arith.constant 0 : index
    %3 = vector.load %arg5[%c0, %c0_1] : memref<2x10xf32, #tpu.memory_space<vmem>>, vector<2x10xf32>
    %c0_2 = arith.constant 0 : index
    %c0_3 = arith.constant 0 : index
    %4 = vector.load %arg2[%c0_2, %c0_3] : memref<2x512xbf16, #tpu.memory_space<vmem>>, vector<2x512xbf16>
    %c0_4 = arith.constant 0 : index
    %c0_5 = arith.constant 0 : index
    %5 = vector.load %arg3[%c0_4, %c0_5] : memref<10x512xbf16, #tpu.memory_space<vmem>>, vector<10x512xbf16>
    %cst = arith.constant dense<0.000000e+00> : vector<2x10xf32>
    %6 = tpu.matmul %4, %5, %cst {dimension_numbers = #tpu.dot_dimension_numbers<[1], [1], [0], [0], [0, 0, 1, 0], [], []>} : vector<2x512xbf16>, vector<10x512xbf16>, vector<2x10xf32> -> vector<2x10xf32>
    %7 = arith.addf %3, %6 : vector<2x10xf32>
    %c0_6 = arith.constant 0 : index
    %c0_7 = arith.constant 0 : index
    %8 = vector.load %arg5[%c0_6, %c0_7] : memref<2x10xf32, #tpu.memory_space<vmem>>, vector<2x10xf32>
    tpu.vector_store %arg5[%c0_6, %c0_7], %7 {strides = array<i32>} : memref<2x10xf32, #tpu.memory_space<vmem>>, vector<2x10xf32>,
    %c1_i32 = arith.constant 1 : i32
    %9 = arith.cmpi eq, %arg1, %c1_i32 : i32
    %10 = arith.extui %9 : i1 to i32
    %c0_i32_8 = arith.constant 0 : i32
    %11 = arith.cmpi ne, %10, %c0_i32_8 : i32
    scf.if %11 {
      %c0_9 = arith.constant 0 : index
      %c0_10 = arith.constant 0 : index
      %12 = vector.load %arg5[%c0_9, %c0_10] : memref<2x10xf32, #tpu.memory_space<vmem>>, vector<2x10xf32>
      %c0_11 = arith.constant 0 : index
      %c0_12 = arith.constant 0 : index
      %13 = vector.load %arg4[%c0_11, %c0_12] : memref<1x10xf32, #tpu.memory_space<vmem>>, vector<1x10xf32>
      %14 = vector.broadcast %13 : vector<1x10xf32> to vector<2x10xf32>
      %15 = arith.addf %12, %14 : vector<2x10xf32>
      %c0_13 = arith.constant 0 : index
      %c0_14 = arith.constant 0 : index
      %16 = vector.load %arg5[%c0_13, %c0_14] : memref<2x10xf32, #tpu.memory_space<vmem>>, vector<2x10xf32>
      tpu.vector_store %arg5[%c0_13, %c0_14], %15 {strides = array<i32>} : memref<2x10xf32, #tpu.memory_space<vmem>>, vector<2x10xf32>,
    } else {
    }
    return
  }
  func.func @transform_0(%arg0: i32, %arg1: i32) -> (i32, i32) {
    %c0_i32 = arith.constant 0 : i32
    return %arg0, %arg1 : i32, i32
  }
  func.func @transform_1(%arg0: i32, %arg1: i32) -> (i32, i32) {
    %c0_i32 = arith.constant 0 : i32
    %c0_i32_0 = arith.constant 0 : i32
    return %c0_i32, %arg1 : i32, i32
  }
  func.func @transform_2(%arg0: i32, %arg1: i32) -> (i32, i32) {
    %c0_i32 = arith.constant 0 : i32
    %c0_i32_0 = arith.constant 0 : i32
    %c0_i32_1 = arith.constant 0 : i32
    return %c0_i32, %c0_i32_0 : i32, i32
  }
  func.func @transform_3(%arg0: i32, %arg1: i32) -> (i32, i32) {
    %c0_i32 = arith.constant 0 : i32
    %c0_i32_0 = arith.constant 0 : i32
    return %arg0, %c0_i32 : i32, i32
  }
}

</mosaic_0001>

<llo_original>
// kernel: tpu_custom_call.1
$region0: #{tpu_custom_call.1}
  #allocation0 [shape = 'u32[]', space=smem, size = 0x4, offset = 0x4, fixed_abs, tag = 'smem constant byte address 0x4 - core index']
  #allocation1 [shape = 'u32[72,128]{1,0:T(1,128)}', space=vmem, size = 0x9000, scoped, tag = 'internal scratch']
  %s0 = inlined_call_operand.hbm [shape: bf16[2,1024], index: 0, kind: input, shape index: {}]
  %s1 = inlined_call_operand.hbm [shape: bf16[10,1024], index: 1, kind: input, shape index: {}]
  %s2 = inlined_call_operand.vmem [shape: f32[1,10], index: 2, kind: input, shape index: {}]
  %s3 = inlined_call_operand.hbm [shape: f32[2,10], index: 3, kind: output, shape index: {}]
  %s4 = sld [smem:[#allocation0]]
  $region61: #{tpu_custom_call.1} parent=0
    _
  %s6 = ssub.s32 1, %s4
  %s7 = scalar_select 0, %s6, %s4
  $region1: #{tpu_custom_call.1} parent=0
    #allocation2 [shape = 'u8[4096]{0}', space=vmem, size = 0x1000, scoped, tag = 'input window, operand 0']
    #allocation3 [shape = 's32[2]{0}', space=sflag, size = 0x8, scoped, tag = 'scoped memory for tpu_custom_call.1']
    #allocation4 [shape = 's32[2]{0}', space=sflag, size = 0x8, scoped, tag = 'scoped memory for tpu_custom_call.1']
    #allocation5 [shape = 'u8[32768]{0}', space=vmem, size = 0x8000, scoped, tag = 'input window, operand 1']
    #allocation6 [shape = 's32[2]{0}', space=sflag, size = 0x8, scoped, tag = 'scoped memory for tpu_custom_call.1']
    #allocation7 [shape = 'u8[1024]{0}', space=vmem, size = 0x400, scoped, tag = 'output window, operand 0, single buffered']
    %8 = vsyncpa [#allocation3], 0
    %s9 = scalar_lea.sflag [#allocation3], 1
    %10 = vsyncpa %s9, 0
    %11 = vsyncpa [#allocation6], 0
    %s12 = scalar_lea.sflag [#allocation6], 1
    %13 = vsyncpa %s12, 0
    %14 = vsyncpa [#allocation4], 0
    loop: start=0, step=1, limit=4
    $region2: #{tpu_custom_call.1} parent=1 // loop_pre_header
      _
    $region3: #{tpu_custom_call.1} parent=1 // loop_header
      %s16 = sphi 0, %s20
      %p17 = scmp.ge.s32.totalorder %s16, 4
      %s23 = sphi 0, %s35
      %s24 = sphi 0, %s31
      %s25 = sphi 0, %s23
      %s26 = sphi 0, %s24
      %s27 = sphi 0, %s25
      %s28 = sphi 0, %s26
      %s40 = sphi 0, %s42
      %s43 = sphi 0, %s40
      %s44 = sphi 0, %s43
      %s60 = sphi 0, %s44
      %s66 = sphi 0, %s68
      %s69 = sphi 0, %s66
      %s70 = sphi 0, %s69
      %s86 = sphi 0, %s70
      %s90 = sphi 0, %s90
      %s92 = sphi 0, %s90
      %s93 = sphi 0, %s92
      %s107 = sphi 0, %s93
      %s113 = sphi 0, %s115
      %s116 = sphi 0, %s113
      %s117 = sphi 0, %s116
      %s133 = sphi 0, %s117
    $region4: #{tpu_custom_call.1} parent=1 // loop_header_branch
      %19 = sbr.rel (%p17) target = $region8
    $region5: #{tpu_custom_call.1} parent=1 // loop_body
      %s21 = ssub.s32 %s16, 1
      %s22 = ssub.s32 %s16, 2
      %s29 = sadd.s32 1, %s24
      %p30 = scmp.ge.s32.totalorder %s29, 2
      %s31 = scalar_select %p30, 0, %s29
      %s32 = sadd.s32 1, %s23
      %s33 = scalar_select %p30, %s32, %s23
      %p34 = scmp.ge.s32.totalorder %s33, 1
      %s35 = scalar_select %p34, 0, %s33
      %s36 = ssub.s32 %s23, %s35
      %s37 = ssub.s32 %s24, %s31
      %s38 = sor.u32 %s36, %s37
      %p39 = scmp.eq.s32.totalorder %s38, 0
      %s41 = sadd.s32 %s40, 1
      %s42 = scalar_select %p39, %s40, %s41
      %p45 = pneg %p39
      %p46 = scmp.eq.s32.totalorder %s16, 1
      %p47 = por %p45, %p46
      %p48 = scmp.ne.s32.totalorder %s40, %s43
      %p49 = scmp.eq.s32.totalorder %s16, 0
      %p50 = por %p48, %p49
      %p51 = scmp.ne.s32.totalorder %s40, %s43
      %p52 = scmp.eq.s32.totalorder %s21, 1
      %p53 = por %p51, %p52
      %p54 = scmp.ne.s32.totalorder %s43, %s44
      %p55 = scmp.eq.s32.totalorder %s21, 0
      %p56 = por %p54, %p55
      %p57 = scmp.ne.s32.totalorder %s43, %s44
      %p58 = scmp.eq.s32.totalorder %s22, 1
      %p59 = por %p57, %p58
      %p61 = scmp.ne.s32.totalorder %s44, %s60
      %p62 = scmp.eq.s32.totalorder %s22, 0
      %p63 = por %p61, %p62
      %s64 = ssub.s32 %s24, %s31
      %p65 = scmp.eq.s32.totalorder %s64, 0
      %s67 = sadd.s32 %s66, 1
      %s68 = scalar_select %p65, %s66, %s67
      %p71 = pneg %p65
      %p72 = scmp.eq.s32.totalorder %s16, 1
      %p73 = por %p71, %p72
      %p74 = scmp.ne.s32.totalorder %s66, %s69
      %p75 = scmp.eq.s32.totalorder %s16, 0
      %p76 = por %p74, %p75
      %p77 = scmp.ne.s32.totalorder %s66, %s69
      %p78 = scmp.eq.s32.totalorder %s21, 1
      %p79 = por %p77, %p78
      %p80 = scmp.ne.s32.totalorder %s69, %s70
      %p81 = scmp.eq.s32.totalorder %s21, 0
      %p82 = por %p80, %p81
      %p83 = scmp.ne.s32.totalorder %s69, %s70
      %p84 = scmp.eq.s32.totalorder %s22, 1
      %p85 = por %p83, %p84
      %p87 = scmp.ne.s32.totalorder %s70, %s86
      %p88 = scmp.eq.s32.totalorder %s22, 0
      %p89 = por %p87, %p88
      %s91 = sadd.s32 %s90, 1
      %p94 = scmp.eq.s32.totalorder %s16, 1
      %p95 = scmp.ne.s32.totalorder %s90, %s92
      %p96 = scmp.eq.s32.totalorder %s16, 0
      %p97 = por %p95, %p96
      %p98 = scmp.ne.s32.totalorder %s90, %s92
      %p99 = scmp.eq.s32.totalorder %s21, 1
      %p100 = por %p98, %p99
      %p101 = scmp.ne.s32.totalorder %s92, %s93
      %p102 = scmp.eq.s32.totalorder %s21, 0
      %p103 = por %p101, %p102
      %p104 = scmp.ne.s32.totalorder %s92, %s93
      %p105 = scmp.eq.s32.totalorder %s22, 1
      %p106 = por %p104, %p105
      %p108 = scmp.ne.s32.totalorder %s93, %s107
      %p109 = scmp.eq.s32.totalorder %s22, 0
      %p110 = por %p108, %p109
      %s111 = ssub.s32 %s23, %s35
      %p112 = scmp.eq.s32.totalorder %s111, 0
      %s114 = sadd.s32 %s113, 1
      %s115 = scalar_select %p112, %s113, %s114
      %p118 = pneg %p112
      %p119 = scmp.eq.s32.totalorder %s16, 1
      %p120 = por %p118, %p119
      %p121 = scmp.ne.s32.totalorder %s113, %s116
      %p122 = scmp.eq.s32.totalorder %s16, 0
      %p123 = por %p121, %p122
      %p124 = scmp.ne.s32.totalorder %s113, %s116
      %p125 = scmp.eq.s32.totalorder %s21, 1
      %p126 = por %p124, %p125
      %p127 = scmp.ne.s32.totalorder %s116, %s117
      %p128 = scmp.eq.s32.totalorder %s21, 0
      %p129 = por %p127, %p128
      %p130 = scmp.ne.s32.totalorder %s116, %s117
      %p131 = scmp.eq.s32.totalorder %s22, 1
      %p132 = por %p130, %p131
      %p134 = scmp.ne.s32.totalorder %s117, %s133
      %p135 = scmp.eq.s32.totalorder %s22, 0
      %p136 = por %p134, %p135
      %p137 = scmp.le.s32.totalorder 1, %s16
      %p138 = scmp.lt.s32.totalorder %s16, 3
      %p139 = pnand %p137, %p138
      %p140 = pneg %p139
      // Predicated region
      $region9: #{tpu_custom_call.1} parent=5 // pred_check
        _
      $region10: #{tpu_custom_call.1} parent=5 // pred_check_branch
        %142 = sbr.rel (%p139) target = $region12
      $region11: #{tpu_custom_call.1} parent=5 // pred_region
        %s143 = ssub.s32 %s16, 1
        // Predicated region
        $region13: #{tpu_custom_call.1} parent=11 // pred_check
          %p144 = pneg %p103
        $region14: #{tpu_custom_call.1} parent=11 // pred_check_branch
          %146 = sbr.rel (%p144) target = $region16
        $region15: #{tpu_custom_call.1} parent=11 // pred_region
          _
        $region16: #{tpu_custom_call.1} parent=11 // pred_fallthru
          _
      $region12: #{tpu_custom_call.1} parent=5 // pred_fallthru
        _
      %p147 = scmp.lt.s32.totalorder %s16, 2
      // Predicated region
      $region17: #{tpu_custom_call.1} parent=5 // pred_check
        %p148 = pneg %p147
      $region18: #{tpu_custom_call.1} parent=5 // pred_check_branch
        %150 = sbr.rel (%p148) target = $region20
      $region19: #{tpu_custom_call.1} parent=5 // pred_region
        // Predicated region
        $region21: #{tpu_custom_call.1} parent=19 // pred_check
          %p151 = pneg %p50
        $region22: #{tpu_custom_call.1} parent=19 // pred_check_branch
          %153 = sbr.rel (%p151) target = $region24
        $region23: #{tpu_custom_call.1} parent=19 // pred_region
          %s154 = sand.u32 %s40, 1
          %s155 = scalar_lea.sflag [#allocation3], %s154
          %s156 = sand.u32 %s40, 1
          %s157 = smul.addr %s156, 4
          %s158 = scalar_lea.vmem [#allocation2], %s157
          %s159 = smul.u32 4, %s24
          %161 = vsyncadd %s155, 0
          %s162 = smul.addr %s23, 8
          %s163 = sadd.s32 %s159, %s162
          %s164 = scalar_lea.hbm %s0, %s163
          %s166 = sshll.u32 %s164, 4
          %s167 = int_to_ptr.hbm [resolvable:$true] %s166
          %s168 = sshll.u32 %s158, 4
          %s169 = int_to_ptr.vmem [resolvable:$true] %s168
          %171 = dma.hbm_to_vmem [thread:$0]  %s167, 64, %s169, %s155
        $region24: #{tpu_custom_call.1} parent=19 // pred_fallthru
          _
        // Predicated region
        $region25: #{tpu_custom_call.1} parent=19 // pred_check
          %p172 = pneg %p76
        $region26: #{tpu_custom_call.1} parent=19 // pred_check_branch
          %174 = sbr.rel (%p172) target = $region28
        $region27: #{tpu_custom_call.1} parent=19 // pred_region
          %s175 = sand.u32 %s66, 1
          %s176 = scalar_lea.sflag [#allocation6], %s175
          %s177 = sand.u32 %s66, 1
          %s178 = smul.addr %s177, 32
          %s179 = scalar_lea.vmem [#allocation5], %s178
          %s180 = smul.u32 4, %s24
          %182 = vsyncadd %s176, 0
          %s183 = smul.addr %s180, 4
          %s184 = scalar_lea.hbm %s1, %s183
          %s185 = sshll.u32 %s184, 4
          %s186 = int_to_ptr.hbm [resolvable:$true] %s185
          %s187 = sshll.u32 %s179, 4
          %s188 = int_to_ptr.vmem [resolvable:$true] %s187
          %193 = dma.hbm_to_vmem [thread:$0]  %s186, 512, %s188, %s176, 512, 256, 16
        $region28: #{tpu_custom_call.1} parent=19 // pred_fallthru
          _
      $region20: #{tpu_custom_call.1} parent=5 // pred_fallthru
        _
      %p194 = scmp.le.s32.totalorder 1, %s16
      %p195 = scmp.lt.s32.totalorder %s16, 3
      %p196 = pnand %p194, %p195
      %p197 = pneg %p196
      // Predicated region
      $region29: #{tpu_custom_call.1} parent=5 // pred_check
        _
      $region30: #{tpu_custom_call.1} parent=5 // pred_check_branch
        %199 = sbr.rel (%p196) target = $region32
      $region31: #{tpu_custom_call.1} parent=5 // pred_region
        %s200 = ssub.s32 %s16, 1
        %s201 = sand.u32 %s43, 1
        %s202 = scalar_lea.sflag [#allocation3], %s201
        %s203 = sand.u32 %s43, 1
        %s204 = smul.addr %s203, 4
        %s205 = scalar_lea.vmem [#allocation2], %s204
        // Predicated region
        $region33: #{tpu_custom_call.1} parent=31 // pred_check
          %p206 = pneg %p56
        $region34: #{tpu_custom_call.1} parent=31 // pred_check_branch
          %208 = sbr.rel (%p206) target = $region36
        $region35: #{tpu_custom_call.1} parent=31 // pred_region
          %210 = dma.done %s202, 64
        $region36: #{tpu_custom_call.1} parent=31 // pred_fallthru
          _
        %s211 = sand.u32 %s69, 1
        %s212 = scalar_lea.sflag [#allocation6], %s211
        %s213 = sand.u32 %s69, 1
        %s214 = smul.addr %s213, 32
        %s215 = scalar_lea.vmem [#allocation5], %s214
        // Predicated region
        $region37: #{tpu_custom_call.1} parent=31 // pred_check
          %p216 = pneg %p82
        $region38: #{tpu_custom_call.1} parent=31 // pred_check_branch
          %218 = sbr.rel (%p216) target = $region40
        $region39: #{tpu_custom_call.1} parent=31 // pred_region
          %220 = dma.done %s212, 512
        $region40: #{tpu_custom_call.1} parent=31 // pred_fallthru
          _
        %s221 = sand.u32 %s43, 1
        %s222 = scalar_lea.sflag [#allocation3], %s221
        %s223 = sand.u32 %s43, 1
        %s224 = smul.addr %s223, 4
        %s225 = scalar_lea.vmem [#allocation2], %s224
        %p226 = pneg %p56
        %p227 = pneg %p53
        %s228 = sand.u32 %s69, 1
        %s229 = scalar_lea.sflag [#allocation6], %s228
        %s230 = sand.u32 %s69, 1
        %s231 = smul.addr %s230, 32
        %s232 = scalar_lea.vmem [#allocation5], %s231
        %p233 = pneg %p82
        %p234 = pneg %p79
        %p235 = pneg %p103
        %p236 = pneg %p100
        %p237 = pneg %p129
        %p238 = pneg %p126
        %s239 = smul.u32 4, %s26
        %s240 = smul.u32 4, %s26
        %p242 = scmp.eq.s32.totalorder %s26, 0
        // Predicated region
        $region41: #{tpu_custom_call.1} parent=31 // pred_check
          %p243 = pneg %p242
        $region42: #{tpu_custom_call.1} parent=31 // pred_check_branch
          %245 = sbr.rel (%p243) target = $region44
        $region43: #{tpu_custom_call.1} parent=31 // pred_region
          %vm246 = vcmask 74752
          %247 = vst.msk [vmem:[#allocation7] sm:$0x3] %vm246, 0.0
        $region44: #{tpu_custom_call.1} parent=31 // pred_fallthru
          _
        %v248 = vld [vmem:[#allocation7] sm:$0x3]
        %v249 = vld [vmem:[%s205] sm:$0xf]
        %v250 = vld [vmem:[%s215] sm:$0xff]
        %v251 = vld [vmem:[%s215 + $0x8] sm:$0xff]
        %v252 = vld [vmem:[%s215 + $0x10] sm:$0x11]
        %v253 = vld [vmem:[%s215 + $0x18] sm:$0x11]
        %255 = vst [vmem:[#allocation1] ss:$9 sm:$0xff] %v249
        %v256 = vld [vmem:[#allocation1] sm:$0xff]
        %v257 = vld [vmem:[#allocation1 + $0x9] sm:$0xff]
        %v258 = vld [vmem:[#allocation1 + $0x12] sm:$0xff]
        %v259 = vld [vmem:[#allocation1 + $0x1b] sm:$0xff]
        %v268 = vunpack.c.l.b16 %v250
        %v269 = vunpack.c.h.b16 %v250
        %v270 = vunpack.c.l.b16 %v251
        %v271 = vunpack.c.h.b16 %v251
        %v272 = vunpack.c.l.b16 %v252
        %v273 = vunpack.c.h.b16 %v252
        %v274 = vunpack.c.l.b16 %v253
        %v275 = vunpack.c.h.b16 %v253
        %v276 = vpack.c.b16 %v272, %v268
        %v277 = vpack.c.b16 %v273, %v269
        %v278 = vpack.c.b16 %v274, %v270
        %v279 = vpack.c.b16 %v275, %v271
        %284 = vmatpush.bf16.xpose.msra.mxu0 0
        %285 = vmatpush.bf16.xpose.msra.mxu0 0
        %286 = vmatpush.bf16.xpose.msra.mxu0 0
        %287 = vmatpush.bf16.xpose.msra.mxu0 0
        %288 = vmatpush.bf16.xpose.msra.mxu0 0
        %289 = vmatpush.bf16.xpose.msra.mxu0 0
        %290 = vmatpush.bf16.xpose.msra.mxu0 0
        %291 = vmatpush.bf16.xpose.msra.mxu0 %v276
        %292 = vmatmul.bf16.gmra.mxu0 %v256
        %v293 = vpop.f32.mrf.mxu0
        %v294 = vadd.f32 0.0, %v293
        %v295 = vpop.f32.mrf.mxu0
        %296 = vdwg.mxu0
        %297 = vmatpush.bf16.xpose.msra.mxu0 0
        %298 = vmatpush.bf16.xpose.msra.mxu0 0
        %299 = vmatpush.bf16.xpose.msra.mxu0 0
        %300 = vmatpush.bf16.xpose.msra.mxu0 0
        %301 = vmatpush.bf16.xpose.msra.mxu0 0
        %302 = vmatpush.bf16.xpose.msra.mxu0 0
        %303 = vmatpush.bf16.xpose.msra.mxu0 0
        %304 = vmatpush.bf16.xpose.msra.mxu0 %v277
        %305 = vmatmul.bf16.gmra.mxu0 %v257
        %v306 = vpop.f32.mrf.mxu0
        %v307 = vadd.f32 %v294, %v306
        %v308 = vpop.f32.mrf.mxu0
        %309 = vdwg.mxu0
        %310 = vmatpush.bf16.xpose.msra.mxu0 0
        %311 = vmatpush.bf16.xpose.msra.mxu0 0
        %312 = vmatpush.bf16.xpose.msra.mxu0 0
        %313 = vmatpush.bf16.xpose.msra.mxu0 0
        %314 = vmatpush.bf16.xpose.msra.mxu0 0
        %315 = vmatpush.bf16.xpose.msra.mxu0 0
        %316 = vmatpush.bf16.xpose.msra.mxu0 0
        %317 = vmatpush.bf16.xpose.msra.mxu0 %v278
        %318 = vmatmul.bf16.gmra.mxu0 %v258
        %v319 = vpop.f32.mrf.mxu0
        %v320 = vadd.f32 %v307, %v319
        %v321 = vpop.f32.mrf.mxu0
        %322 = vdwg.mxu0
        %323 = vmatpush.bf16.xpose.msra.mxu0 0
        %324 = vmatpush.bf16.xpose.msra.mxu0 0
        %325 = vmatpush.bf16.xpose.msra.mxu0 0
        %326 = vmatpush.bf16.xpose.msra.mxu0 0
        %327 = vmatpush.bf16.xpose.msra.mxu0 0
        %328 = vmatpush.bf16.xpose.msra.mxu0 0
        %329 = vmatpush.bf16.xpose.msra.mxu0 0
        %330 = vmatpush.bf16.xpose.msra.mxu0 %v279
        %331 = vmatmul.bf16.gmra.mxu0 %v259
        %v332 = vpop.f32.mrf.mxu0
        %v333 = vadd.f32 %v320, %v332
        %v334 = vpop.f32.mrf.mxu0
        %335 = vdwg.mxu0
        %v336 = vadd.f32 %v248, %v333
        %vm337 = vcmask 74752
        %338 = vst.msk [vmem:[#allocation7] sm:$0x3] %vm337, %v336
        %p339 = scmp.eq.s32.totalorder %s26, 1
        // Predicated region
        $region45: #{tpu_custom_call.1} parent=31 // pred_check
          %p340 = pneg %p339
        $region46: #{tpu_custom_call.1} parent=31 // pred_check_branch
          %342 = sbr.rel (%p340) target = $region48
        $region47: #{tpu_custom_call.1} parent=31 // pred_region
          %v343 = vld [vmem:[#allocation7] sm:$0x3]
          %v344 = vld [vmem:[%s2] sm:$0x1]
          %v346 = vperm.slane %v344, 0
          %v348 = vadd.f32 %v343, %v346
          %349 = vst.msk [vmem:[#allocation7] sm:$0x3] %vm337, %v348
        $region48: #{tpu_custom_call.1} parent=31 // pred_fallthru
          _
        // Predicated region
        $region49: #{tpu_custom_call.1} parent=31 // pred_check
          %p350 = pneg %p126
        $region50: #{tpu_custom_call.1} parent=31 // pred_check_branch
          %352 = sbr.rel (%p350) target = $region52
        $region51: #{tpu_custom_call.1} parent=31 // pred_region
          %354 = vsyncadd [#allocation4], 0
          %s355 = smul.addr %s25, 2
          %s356 = scalar_lea.hbm %s3, %s355
          %s358 = sshll.u32 [#allocation7], 4
          %s359 = int_to_ptr.vmem [resolvable:$true] %s358
          %s360 = sshll.u32 %s356, 4
          %s361 = int_to_ptr.hbm [resolvable:$true] %s360
          %363 = dma.vmem_to_hbm [thread:$0]  %s359, 32, %s361, [#allocation4]
        $region52: #{tpu_custom_call.1} parent=31 // pred_fallthru
          _
        // Predicated region
        $region53: #{tpu_custom_call.1} parent=31 // pred_check
          %p364 = pneg %p126
        $region54: #{tpu_custom_call.1} parent=31 // pred_check_branch
          %366 = sbr.rel (%p364) target = $region56
        $region55: #{tpu_custom_call.1} parent=31 // pred_region
          %368 = dma.done [#allocation4], 32
        $region56: #{tpu_custom_call.1} parent=31 // pred_fallthru
          _
      $region32: #{tpu_custom_call.1} parent=5 // pred_fallthru
        _
      %p369 = scmp.le.s32.totalorder 2, %s16
      // Predicated region
      $region57: #{tpu_custom_call.1} parent=5 // pred_check
        %p370 = pneg %p369
      $region58: #{tpu_custom_call.1} parent=5 // pred_check_branch
        %372 = sbr.rel (%p370) target = $region60
      $region59: #{tpu_custom_call.1} parent=5 // pred_region
        %s373 = ssub.s32 %s16, 2
      $region60: #{tpu_custom_call.1} parent=5 // pred_fallthru
        _
    $region6: #{tpu_custom_call.1} parent=1 // loop_footer
      %s20 = sadd.s32 1, %s16
    $region7: #{tpu_custom_call.1} parent=1 // loop_footer_branch
      %15 = sbr.rel target = $region3
    $region8: #{tpu_custom_call.1} parent=1 // loop_exit
      _
    %374 = vsyncpa [#allocation3], 1
    %s375 = scalar_lea.sflag [#allocation3], 1
    %376 = vsyncpa %s375, 1
    %377 = vsyncpa [#allocation6], 1
    %s378 = scalar_lea.sflag [#allocation6], 1
    %379 = vsyncpa %s378, 1
    %380 = vsyncpa [#allocation4], 1
    %s381 = scalar_lea.sflag [#allocation4], 1
    %382 = vsyncpa %s381, 1

</llo_original>
